<compile_context>
chip_gen: v7x
topology: tpu7x:2x2x1
jax: 0.10.0
libtpu: 0.0.40
codegen_flags: <defaults>
</compile_context>

<pallas_src>
import functools

import jax
import jax.numpy as jnp
from jax.experimental import pallas as pl
from jax.experimental.pallas import tpu as pltpu

_LANES = 128
# 4096 rows x 128 lanes x 4 B = 2 MiB per f32 tile; 4 inputs x 2 pipeline
# buffers = 16 MiB, comfortably inside the 40 MiB scoped-VMEM limit requested
# below (v7x physical VMEM is 64 MiB).
_MAX_TILE_ROWS = 4096
_VMEM_LIMIT_BYTES = 40 * 1024 * 1024


def _cdiv(a: int, b: int) -> int:
    return -(-a // b)


def _round_up(x: int, m: int) -> int:
    return _cdiv(x, m) * m


def _num_tensorcores() -> int:
    """Best-effort TensorCores-per-chip (2 on v7x / megacore, else 1)."""
    try:
        info = pltpu.get_tpu_info()
    except Exception:
        return 1
    for attr in ("num_cores", "core_count", "num_tensorcores", "tensorcore_count"):
        n = getattr(info, attr, None)
        if isinstance(n, int) and n > 0:
            return n
    return 1


def _dloss_kernel(stu_ref, tea_ref, rnd_ref, real_ref, out_ref, *,
                  tile_rows: int, tiles_per_core: int, valid_rows: int,
                  mask_rows: bool):
    """Streaming hinge-loss partial sums.

    out_ref (VMEM, (1, 4, 8, 128) f32 block, one per core): per-term partial
    sum slabs, accumulated across the "arbitrary" tile axis.
      idx 0: sum relu(1 - teacher), idx 1: sum relu(1 + student),
      idx 2: sum relu(1 - real),    idx 3: sum relu(1 + random)
    """
    c = pl.program_id(0)   # TensorCore ("parallel") axis
    j = pl.program_id(1)   # row-tile ("arbitrary") reduction axis

    @pl.when(j == 0)
    def _init():
        out_ref[...] = jnp.zeros_like(out_ref)

    if mask_rows:
        # Final block may hang past the end of the data; mask garbage rows.
        row0 = (c * tiles_per_core + j) * tile_rows
        row_idx = jax.lax.broadcasted_iota(jnp.int32, (tile_rows, 1), 0) + row0
        keep = row_idx < valid_rows                      # (tile_rows, 1) bool
    else:
        keep = None

    def hinge_minus(ref):     # relu(1 - x), native dtype, cast to f32 for accum
        x = ref[...]
        return jnp.maximum(1.0 - x, 0.0).astype(jnp.float32)

    def hinge_plus(ref):      # relu(1 + x)
        x = ref[...]
        return jnp.maximum(1.0 + x, 0.0).astype(jnp.float32)

    def accum(idx, hf):
        if keep is not None:
            # select (not multiply) so OOB NaN/Inf garbage never propagates.
            hf = jnp.where(keep, hf, 0.0)
        rem = tile_rows % 8
        if rem:
            # Only the tiny single-tile case has a ragged row count; pad it up
            # to a full vreg group so the reshape below stays a no-op regroup.
            hf = jnp.concatenate(
                [hf, jnp.zeros((8 - rem, _LANES), jnp.float32)], axis=0)
        # (rows, 128) -> (rows//8, 8, 128): pure sublane regrouping, the
        # leading-axis sum is plain vreg adds (VPU) -- no XLU in the hot loop.
        out_ref[0, idx] += hf.reshape(-1, 8, _LANES).sum(axis=0)

    accum(0, hinge_minus(tea_ref))
    accum(1, hinge_plus(stu_ref))
    accum(2, hinge_minus(real_ref))
    accum(3, hinge_plus(rnd_ref))


def dloss_forward(dis_student, dis_teacher, dis_random, dis_real,
                  lambda_gan: float, *, max_tile_rows: int = _MAX_TILE_ROWS,
                  num_cores=None):
    """Pallas implementation of DLoss.forward.

    Returns (total_loss, log); log values are device scalars (no host syncs).
    """
    tensors = (dis_student, dis_teacher, dis_random, dis_real)
    # Neutral pad values: relu(1 + (-1)) == 0 for the "plus" terms
    # (student/random), relu(1 - (+1)) == 0 for the "minus" terms (teacher/real).
    pad_vals = (-1.0, 1.0, -1.0, 1.0)
    sizes = [int(x.size) for x in tensors]
    rows_each = [_cdiv(n, _LANES) for n in sizes]
    rows = max(rows_each)

    if num_cores is None:
        num_cores = _num_tensorcores()
    num_cores = max(1, min(int(num_cores), 2))
    if rows < 16:
        num_cores = 1

    # ---- tiling: near-even split, bounded over-read, no fully-OOB blocks ----
    if num_cores == 1 and rows <= max_tile_rows:
        num_tiles, tile_rows = 1, rows          # one full-extent block, no OOB
    else:
        num_tiles = _round_up(_cdiv(rows, max_tile_rows), num_cores)
        tile_rows = _round_up(_cdiv(rows, num_tiles), 8)
        # Guarantee every block owns at least one valid row.
        while num_tiles > num_cores and (num_tiles - 1) * tile_rows >= rows:
            num_tiles -= num_cores
            tile_rows = _round_up(_cdiv(rows, num_tiles), 8)
    tiles_per_core = num_tiles // num_cores
    coverage = num_tiles * tile_rows
    mask_rows = coverage > rows                 # compile-time constant

    # ---- lane-dense slabs in the NATIVE dtype (copy-free when aligned) ----
    slabs = []
    for x, pv in zip(tensors, pad_vals):
        flat = x.reshape(-1)
        target = rows * _LANES
        if flat.size != target:
            # Pads only the ragged lane tail (and, if the four tensors differ
            # in size, up to the common row count) -- never to tile coverage.
            flat = jnp.pad(flat, (0, target - flat.size), constant_values=pv)
        slabs.append(flat.reshape(rows, _LANES))
    stu, tea, rnd, real = slabs

    kernel = functools.partial(
        _dloss_kernel, tile_rows=tile_rows, tiles_per_core=tiles_per_core,
        valid_rows=rows, mask_rows=mask_rows)

    in_spec = pl.BlockSpec((tile_rows, _LANES),
                           lambda c, j: (c * tiles_per_core + j, 0))
    # Per-core lane-dense accumulator block: no cross-core write race.
    out_spec = pl.BlockSpec((1, 4, 8, _LANES), lambda c, j: (c, 0, 0, 0))

    bytes_in = sum(int(s.size) * s.dtype.itemsize for s in slabs)
    partial_sums = pl.pallas_call(
        kernel,
        out_shape=jax.ShapeDtypeStruct((num_cores, 4, 8, _LANES), jnp.float32),
        grid_spec=pltpu.PrefetchScalarGridSpec(
            num_scalar_prefetch=0,
            grid=(num_cores, tiles_per_core),
            in_specs=[in_spec, in_spec, in_spec, in_spec],
            out_specs=out_spec,
        ),
        compiler_params=pltpu.CompilerParams(
            dimension_semantics=("parallel", "arbitrary"),
            vmem_limit_bytes=_VMEM_LIMIT_BYTES,
        ),
        cost_estimate=pl.CostEstimate(
            flops=6 * sum(sizes),
            transcendentals=0,
            bytes_accessed=bytes_in + num_cores * 4 * 8 * _LANES * 4,
        ),
    )(stu, tea, rnd, real)

    # Tiny epilogue (a single fused XLA op): cross-core + cross-lane reduce,
    # per-term 1/N scaling and the lambda-weighted total.
    sums = jnp.sum(partial_sums, axis=(0, 2, 3))          # (4,) f32
    teacher_l = sums[0] * jnp.float32(1.0 / sizes[1])
    student_l = sums[1] * jnp.float32(1.0 / sizes[0])
    real_l = sums[2] * jnp.float32(1.0 / sizes[3])
    random_l = sums[3] * jnp.float32(1.0 / sizes[2])
    total_l = teacher_l + student_l + jnp.float32(lambda_gan) * (real_l + random_l)

    # Device scalars in the log; callers can .item() lazily if they need
    # Python floats (avoids five blocking device->host syncs here).
    log = {
        'D/Teacher Loss': teacher_l,
        'D/Student Loss': student_l,
        'D/Real Loss': real_l,
        'D/Random Loss': random_l,
        'D/Total Loss': total_l,
    }
    return total_l, log


def _reference(dis_student, dis_teacher, dis_random, dis_real, lambda_gan):
    """Pure-JAX reference for correctness checking."""
    def hinge(d_real, d_fake):
        return (jnp.mean(jax.nn.relu(1.0 - d_real)),
                jnp.mean(jax.nn.relu(1.0 + d_fake)))
    tea, stu = hinge(dis_teacher, dis_student)
    real, rnd = hinge(dis_real, dis_random)
    return tea + stu + lambda_gan * (real + rnd)


if __name__ == "__main__":
    key = jax.random.PRNGKey(0)
    lambda_gan = 0.5

    def make(k, shape):
        ks = jax.random.split(k, 4)
        return tuple(jax.random.normal(kk, shape, dtype=jnp.float32) for kk in ks)

    k1, k2, k3 = jax.random.split(key, 3)

    # Case 1: patch-GAN style NCHW logits; 2048 elements = 16 lane-rows, so the
    # wrapper takes the copy-free reshape-only (no padding) path.
    s, t, r, re = make(k1, (2, 4, 16, 16))
    total, log = dloss_forward(s, t, r, re, lambda_gan)
    total = jax.block_until_ready(total)
    ref = _reference(s, t, r, re, lambda_gan)
    assert jnp.allclose(total, ref, rtol=1e-5, atol=1e-5), (total, ref)
    ref_tea = jnp.mean(jax.nn.relu(1.0 - t))
    assert jnp.allclose(log['D/Teacher Loss'], ref_tea, rtol=1e-5, atol=1e-5)

    # Case 2: element count NOT a multiple of 128 (ragged lane tail, <8 rows).
    s, t, r, re = make(k2, (2, 1, 15, 15))
    total, _ = dloss_forward(s, t, r, re, lambda_gan)
    total = jax.block_until_ready(total)
    ref = _reference(s, t, r, re, lambda_gan)
    assert jnp.allclose(total, ref, rtol=1e-5, atol=1e-5), (total, ref)

    # Case 3: multi-tile reduction with a masked, partially out-of-bounds final
    # block (small max_tile_rows just to exercise the path at small shapes).
    s, t, r, re = make(k3, (2, 4, 37, 29))
    total, _ = dloss_forward(s, t, r, re, lambda_gan, max_tile_rows=16)
    total = jax.block_until_ready(total)
    ref = _reference(s, t, r, re, lambda_gan)
    assert jnp.allclose(total, ref, rtol=1e-5, atol=1e-5), (total, ref)

    # Case 4: forced 2-"core" grid — exercises the v7x dual-TensorCore path
    # (per-core output blocks); runs sequentially and correctly on 1-TC chips.
    total, _ = dloss_forward(s, t, r, re, lambda_gan, max_tile_rows=16,
                             num_cores=2)
    total = jax.block_until_ready(total)
    assert jnp.allclose(total, ref, rtol=1e-5, atol=1e-5), (total, ref)

    print("KERNEL_OK")
</pallas_src>

<mosaic_0001>
module attributes {stable_mosaic.version = 11 : i64} {
  func.func @_dloss_kernel(%arg0: i32, %arg1: i32, %arg2: memref<16x128xf32, #tpu.memory_space<vmem>>, %arg3: memref<16x128xf32, #tpu.memory_space<vmem>>, %arg4: memref<16x128xf32, #tpu.memory_space<vmem>>, %arg5: memref<16x128xf32, #tpu.memory_space<vmem>>, %arg6: memref<1x4x8x128xf32, #tpu.memory_space<vmem>>) attributes {dimension_semantics = [#tpu.dimension_semantics<parallel>, #tpu.dimension_semantics<arbitrary>], iteration_bounds = array<i64: 1, 1>, scalar_prefetch = 0 : i64, scratch_operands = 0 : i64, tpu.core_type = #tpu.core_type<tc>, window_params = [{transform_indices = @transform_0, window_bounds = array<i64: 16, 128>}, {transform_indices = @transform_1, window_bounds = array<i64: 16, 128>}, {transform_indices = @transform_2, window_bounds = array<i64: 16, 128>}, {transform_indices = @transform_3, window_bounds = array<i64: 16, 128>}, {transform_indices = @transform_4, window_bounds = array<i64: 1, 4, 8, 128>}]} {
    %c0_i32 = arith.constant 0 : i32
    %0 = arith.cmpi eq, %arg1, %c0_i32 : i32
    %1 = arith.extui %0 : i1 to i32
    %c0_i32_0 = arith.constant 0 : i32
    %2 = arith.cmpi ne, %1, %c0_i32_0 : i32
    scf.if %2 {
      %cst_48 = arith.constant 0.000000e+00 : f32
      %55 = vector.broadcast %cst_48 : f32 to vector<1x4x8x128xf32>
      %c0_49 = arith.constant 0 : index
      %c0_50 = arith.constant 0 : index
      %c0_51 = arith.constant 0 : index
      %c0_52 = arith.constant 0 : index
      %56 = vector.load %arg6[%c0_49, %c0_50, %c0_51, %c0_52] : memref<1x4x8x128xf32, #tpu.memory_space<vmem>>, vector<1x4x8x128xf32>
      tpu.vector_store %arg6[%c0_49, %c0_50, %c0_51, %c0_52], %55 {strides = array<i32>} : memref<1x4x8x128xf32, #tpu.memory_space<vmem>>, vector<1x4x8x128xf32>,
    } else {
    }
    %c0 = arith.constant 0 : index
    %c0_1 = arith.constant 0 : index
    %3 = vector.load %arg3[%c0, %c0_1] : memref<16x128xf32, #tpu.memory_space<vmem>>, vector<16x128xf32>
    %cst = arith.constant 1.000000e+00 : f32
    %4 = vector.broadcast %cst : f32 to vector<16x128xf32>
    %5 = arith.subf %4, %3 : vector<16x128xf32>
    %cst_2 = arith.constant 0.000000e+00 : f32
    %6 = vector.broadcast %cst_2 : f32 to vector<16x128xf32>
    %7 = arith.maximumf %5, %6 : vector<16x128xf32>
    %c0_3 = arith.constant 0 : index
    %c0_4 = arith.constant 0 : index
    %c0_5 = arith.constant 0 : index
    %c0_6 = arith.constant 0 : index
    %8 = vector.load %arg6[%c0_3, %c0_4, %c0_5, %c0_6] : memref<1x4x8x128xf32, #tpu.memory_space<vmem>>, vector<1x1x8x128xf32>
    %9 = vector.shape_cast %8 : vector<1x1x8x128xf32> to vector<8x128xf32>
    %10 = vector.shape_cast %7 : vector<16x128xf32> to vector<2x8x128xf32>
    %cst_7 = arith.constant dense<0.000000e+00> : vector<8x128xf32>
    %11 = vector.multi_reduction <add>, %10, %cst_7 [0] : vector<2x8x128xf32> to vector<8x128xf32>
    %12 = arith.addf %9, %11 : vector<8x128xf32>
    %c0_8 = arith.constant 0 : index
    %c0_9 = arith.constant 0 : index
    %c0_10 = arith.constant 0 : index
    %c0_11 = arith.constant 0 : index
    %13 = vector.load %arg6[%c0_8, %c0_9, %c0_10, %c0_11] : memref<1x4x8x128xf32, #tpu.memory_space<vmem>>, vector<1x1x8x128xf32>
    %14 = vector.shape_cast %13 : vector<1x1x8x128xf32> to vector<8x128xf32>
    %15 = vector.shape_cast %12 : vector<8x128xf32> to vector<1x1x8x128xf32>
    tpu.vector_store %arg6[%c0_8, %c0_9, %c0_10, %c0_11], %15 {strides = array<i32>} : memref<1x4x8x128xf32, #tpu.memory_space<vmem>>, vector<1x1x8x128xf32>,
    %c0_12 = arith.constant 0 : index
    %c0_13 = arith.constant 0 : index
    %16 = vector.load %arg2[%c0_12, %c0_13] : memref<16x128xf32, #tpu.memory_space<vmem>>, vector<16x128xf32>
    %cst_14 = arith.constant 1.000000e+00 : f32
    %17 = vector.broadcast %cst_14 : f32 to vector<16x128xf32>
    %18 = arith.addf %17, %16 : vector<16x128xf32>
    %cst_15 = arith.constant 0.000000e+00 : f32
    %19 = vector.broadcast %cst_15 : f32 to vector<16x128xf32>
    %20 = arith.maximumf %18, %19 : vector<16x128xf32>
    %c0_16 = arith.constant 0 : index
    %c1 = arith.constant 1 : index
    %c0_17 = arith.constant 0 : index
    %c0_18 = arith.constant 0 : index
    %21 = vector.load %arg6[%c0_16, %c1, %c0_17, %c0_18] : memref<1x4x8x128xf32, #tpu.memory_space<vmem>>, vector<1x1x8x128xf32>
    %22 = vector.shape_cast %21 : vector<1x1x8x128xf32> to vector<8x128xf32>
    %23 = vector.shape_cast %20 : vector<16x128xf32> to vector<2x8x128xf32>
    %cst_19 = arith.constant dense<0.000000e+00> : vector<8x128xf32>
    %24 = vector.multi_reduction <add>, %23, %cst_19 [0] : vector<2x8x128xf32> to vector<8x128xf32>
    %25 = arith.addf %22, %24 : vector<8x128xf32>
    %c0_20 = arith.constant 0 : index
    %c1_21 = arith.constant 1 : index
    %c0_22 = arith.constant 0 : index
    %c0_23 = arith.constant 0 : index
    %26 = vector.load %arg6[%c0_20, %c1_21, %c0_22, %c0_23] : memref<1x4x8x128xf32, #tpu.memory_space<vmem>>, vector<1x1x8x128xf32>
    %27 = vector.shape_cast %26 : vector<1x1x8x128xf32> to vector<8x128xf32>
    %28 = vector.shape_cast %25 : vector<8x128xf32> to vector<1x1x8x128xf32>
    tpu.vector_store %arg6[%c0_20, %c1_21, %c0_22, %c0_23], %28 {strides = array<i32>} : memref<1x4x8x128xf32, #tpu.memory_space<vmem>>, vector<1x1x8x128xf32>,
    %c0_24 = arith.constant 0 : index
    %c0_25 = arith.constant 0 : index
    %29 = vector.load %arg5[%c0_24, %c0_25] : memref<16x128xf32, #tpu.memory_space<vmem>>, vector<16x128xf32>
    %cst_26 = arith.constant 1.000000e+00 : f32
    %30 = vector.broadcast %cst_26 : f32 to vector<16x128xf32>
    %31 = arith.subf %30, %29 : vector<16x128xf32>
    %cst_27 = arith.constant 0.000000e+00 : f32
    %32 = vector.broadcast %cst_27 : f32 to vector<16x128xf32>
    %33 = arith.maximumf %31, %32 : vector<16x128xf32>
    %c0_28 = arith.constant 0 : index
    %c2 = arith.constant 2 : index
    %c0_29 = arith.constant 0 : index
    %c0_30 = arith.constant 0 : index
    %34 = vector.load %arg6[%c0_28, %c2, %c0_29, %c0_30] : memref<1x4x8x128xf32, #tpu.memory_space<vmem>>, vector<1x1x8x128xf32>
    %35 = vector.shape_cast %34 : vector<1x1x8x128xf32> to vector<8x128xf32>
    %36 = vector.shape_cast %33 : vector<16x128xf32> to vector<2x8x128xf32>
    %cst_31 = arith.constant dense<0.000000e+00> : vector<8x128xf32>
    %37 = vector.multi_reduction <add>, %36, %cst_31 [0] : vector<2x8x128xf32> to vector<8x128xf32>
    %38 = arith.addf %35, %37 : vector<8x128xf32>
    %c0_32 = arith.constant 0 : index
    %c2_33 = arith.constant 2 : index
    %c0_34 = arith.constant 0 : index
    %c0_35 = arith.constant 0 : index
    %39 = vector.load %arg6[%c0_32, %c2_33, %c0_34, %c0_35] : memref<1x4x8x128xf32, #tpu.memory_space<vmem>>, vector<1x1x8x128xf32>
    %40 = vector.shape_cast %39 : vector<1x1x8x128xf32> to vector<8x128xf32>
    %41 = vector.shape_cast %38 : vector<8x128xf32> to vector<1x1x8x128xf32>
    tpu.vector_store %arg6[%c0_32, %c2_33, %c0_34, %c0_35], %41 {strides = array<i32>} : memref<1x4x8x128xf32, #tpu.memory_space<vmem>>, vector<1x1x8x128xf32>,
    %c0_36 = arith.constant 0 : index
    %c0_37 = arith.constant 0 : index
    %42 = vector.load %arg4[%c0_36, %c0_37] : memref<16x128xf32, #tpu.memory_space<vmem>>, vector<16x128xf32>
    %cst_38 = arith.constant 1.000000e+00 : f32
    %43 = vector.broadcast %cst_38 : f32 to vector<16x128xf32>
    %44 = arith.addf %43, %42 : vector<16x128xf32>
    %cst_39 = arith.constant 0.000000e+00 : f32
    %45 = vector.broadcast %cst_39 : f32 to vector<16x128xf32>
    %46 = arith.maximumf %44, %45 : vector<16x128xf32>
    %c0_40 = arith.constant 0 : index
    %c3 = arith.constant 3 : index
    %c0_41 = arith.constant 0 : index
    %c0_42 = arith.constant 0 : index
    %47 = vector.load %arg6[%c0_40, %c3, %c0_41, %c0_42] : memref<1x4x8x128xf32, #tpu.memory_space<vmem>>, vector<1x1x8x128xf32>
    %48 = vector.shape_cast %47 : vector<1x1x8x128xf32> to vector<8x128xf32>
    %49 = vector.shape_cast %46 : vector<16x128xf32> to vector<2x8x128xf32>
    %cst_43 = arith.constant dense<0.000000e+00> : vector<8x128xf32>
    %50 = vector.multi_reduction <add>, %49, %cst_43 [0] : vector<2x8x128xf32> to vector<8x128xf32>
    %51 = arith.addf %48, %50 : vector<8x128xf32>
    %c0_44 = arith.constant 0 : index
    %c3_45 = arith.constant 3 : index
    %c0_46 = arith.constant 0 : index
    %c0_47 = arith.constant 0 : index
    %52 = vector.load %arg6[%c0_44, %c3_45, %c0_46, %c0_47] : memref<1x4x8x128xf32, #tpu.memory_space<vmem>>, vector<1x1x8x128xf32>
    %53 = vector.shape_cast %52 : vector<1x1x8x128xf32> to vector<8x128xf32>
    %54 = vector.shape_cast %51 : vector<8x128xf32> to vector<1x1x8x128xf32>
    tpu.vector_store %arg6[%c0_44, %c3_45, %c0_46, %c0_47], %54 {strides = array<i32>} : memref<1x4x8x128xf32, #tpu.memory_space<vmem>>, vector<1x1x8x128xf32>,
    return
  }
  func.func @transform_0(%arg0: i32, %arg1: i32) -> (i32, i32) {
    %c1_i32 = arith.constant 1 : i32
    %0 = arith.muli %arg0, %c1_i32 : i32
    %1 = arith.addi %0, %arg1 : i32
    %c0_i32 = arith.constant 0 : i32
    %c0_i32_0 = arith.constant 0 : i32
    return %1, %c0_i32 : i32, i32
  }
  func.func @transform_1(%arg0: i32, %arg1: i32) -> (i32, i32) {
    %c1_i32 = arith.constant 1 : i32
    %0 = arith.muli %arg0, %c1_i32 : i32
    %1 = arith.addi %0, %arg1 : i32
    %c0_i32 = arith.constant 0 : i32
    %c0_i32_0 = arith.constant 0 : i32
    return %1, %c0_i32 : i32, i32
  }
  func.func @transform_2(%arg0: i32, %arg1: i32) -> (i32, i32) {
    %c1_i32 = arith.constant 1 : i32
    %0 = arith.muli %arg0, %c1_i32 : i32
    %1 = arith.addi %0, %arg1 : i32
    %c0_i32 = arith.constant 0 : i32
    %c0_i32_0 = arith.constant 0 : i32
    return %1, %c0_i32 : i32, i32
  }
  func.func @transform_3(%arg0: i32, %arg1: i32) -> (i32, i32) {
    %c1_i32 = arith.constant 1 : i32
    %0 = arith.muli %arg0, %c1_i32 : i32
    %1 = arith.addi %0, %arg1 : i32
    %c0_i32 = arith.constant 0 : i32
    %c0_i32_0 = arith.constant 0 : i32
    return %1, %c0_i32 : i32, i32
  }
  func.func @transform_4(%arg0: i32, %arg1: i32) -> (i32, i32, i32, i32) {
    %c0_i32 = arith.constant 0 : i32
    %c0_i32_0 = arith.constant 0 : i32
    %c0_i32_1 = arith.constant 0 : i32
    %c0_i32_2 = arith.constant 0 : i32
    return %arg0, %c0_i32, %c0_i32_0, %c0_i32_1 : i32, i32, i32, i32
  }
}

</mosaic_0001>

<llo_original>
// kernel: tpu_custom_call.1
$region0: #{tpu_custom_call.1}
  #allocation0 [shape = 'u32[]', space=smem, size = 0x4, offset = 0x4, fixed_abs, tag = 'smem constant byte address 0x4 - core index']
  #allocation1 [shape = 'u32[144,128]{1,0:T(1,128)}', space=vmem, size = 0x12000, scoped, tag = 'internal scratch']
  %s0 = inlined_call_operand.hbm [shape: f32[16,128], index: 0, kind: input, shape index: {}]
  %s1 = inlined_call_operand.hbm [shape: f32[16,128], index: 1, kind: input, shape index: {}]
  %s2 = inlined_call_operand.hbm [shape: f32[16,128], index: 2, kind: input, shape index: {}]
  %s3 = inlined_call_operand.hbm [shape: f32[16,128], index: 3, kind: input, shape index: {}]
  %s4 = inlined_call_operand.hbm [shape: f32[1,4,8,128], index: 4, kind: output, shape index: {}]
  %s5 = sld [smem:[#allocation0]]
  $region46: #{tpu_custom_call.1} parent=0
    _
  %s7 = ssub.s32 1, %s5
  %s8 = scalar_select 0, %s7, %s5
  $region1: #{tpu_custom_call.1} parent=0
    #allocation2 [shape = 'u8[8192]{0}', space=vmem, size = 0x2000, scoped, tag = 'input window, operand 0, single buffered']
    #allocation3 [shape = 's32[1]{0}', space=sflag, size = 0x4, scoped, tag = 'scoped memory for tpu_custom_call.1']
    #allocation4 [shape = 's32[1]{0}', space=sflag, size = 0x4, scoped, tag = 'scoped memory for tpu_custom_call.1']
    #allocation5 [shape = 'u8[8192]{0}', space=vmem, size = 0x2000, scoped, tag = 'input window, operand 1, single buffered']
    #allocation6 [shape = 's32[1]{0}', space=sflag, size = 0x4, scoped, tag = 'scoped memory for tpu_custom_call.1']
    #allocation7 [shape = 'u8[8192]{0}', space=vmem, size = 0x2000, scoped, tag = 'input window, operand 2, single buffered']
    #allocation8 [shape = 'u8[8192]{0}', space=vmem, size = 0x2000, scoped, tag = 'input window, operand 3, single buffered']
    #allocation9 [shape = 's32[1]{0}', space=sflag, size = 0x4, scoped, tag = 'scoped memory for tpu_custom_call.1']
    #allocation10 [shape = 'u8[16384]{0}', space=vmem, size = 0x4000, scoped, tag = 'output window, operand 0, single buffered']
    %9 = vsyncpa [#allocation3], 0
    %10 = vsyncpa [#allocation6], 0
    %11 = vsyncpa [#allocation9], 0
    %12 = vsyncpa [#allocation4], 0
    // Predicated region
    $region2: #{tpu_custom_call.1} parent=1 // pred_check
      _
    $region3: #{tpu_custom_call.1} parent=1 // pred_check_branch
      %14 = sbr.rel (0) target = $region5
    $region4: #{tpu_custom_call.1} parent=1 // pred_region
      %s15 = sadd.s32 0, 0
      %s16 = smul.u32 2, %s15
      %s18 = ssub.s32 256, 256
      %19 = vsyncadd [#allocation3], %s18
      %s20 = smul.addr %s16, 128
      %s21 = scalar_lea.hbm %s0, %s20
      %s22 = sshll.u32 [#allocation2], 4
      %s23 = int_to_ptr.vmem [resolvable:$true] %s22
      %28 = dma.hbm_to_vmem [thread:$0]  %s21, 256, %s23, [#allocation3], 128, 128, 8
    $region5: #{tpu_custom_call.1} parent=1 // pred_fallthru
      _
    // Predicated region
    $region6: #{tpu_custom_call.1} parent=1 // pred_check
      _
    $region7: #{tpu_custom_call.1} parent=1 // pred_check_branch
      %30 = sbr.rel (0) target = $region9
    $region8: #{tpu_custom_call.1} parent=1 // pred_region
      %s31 = sadd.s32 0, 0
      %s32 = smul.u32 2, %s31
      %s34 = ssub.s32 256, 256
      %35 = vsyncadd [#allocation6], %s34
      %s36 = smul.addr %s32, 128
      %s37 = scalar_lea.hbm %s1, %s36
      %s38 = sshll.u32 [#allocation5], 4
      %s39 = int_to_ptr.vmem [resolvable:$true] %s38
      %44 = dma.hbm_to_vmem [thread:$0]  %s37, 256, %s39, [#allocation6], 128, 128, 8
    $region9: #{tpu_custom_call.1} parent=1 // pred_fallthru
      _
    // Predicated region
    $region10: #{tpu_custom_call.1} parent=1 // pred_check
      _
    $region11: #{tpu_custom_call.1} parent=1 // pred_check_branch
      %46 = sbr.rel (0) target = $region13
    $region12: #{tpu_custom_call.1} parent=1 // pred_region
      %s47 = sadd.s32 0, 0
      %s48 = smul.u32 2, %s47
      %s50 = ssub.s32 256, 256
      %51 = vsyncadd [#allocation6], %s50
      %s52 = smul.addr %s48, 128
      %s53 = scalar_lea.hbm %s2, %s52
      %s54 = sshll.u32 [#allocation7], 4
      %s55 = int_to_ptr.vmem [resolvable:$true] %s54
      %60 = dma.hbm_to_vmem [thread:$0]  %s53, 256, %s55, [#allocation6], 128, 128, 8
    $region13: #{tpu_custom_call.1} parent=1 // pred_fallthru
      _
    // Predicated region
    $region14: #{tpu_custom_call.1} parent=1 // pred_check
      _
    $region15: #{tpu_custom_call.1} parent=1 // pred_check_branch
      %62 = sbr.rel (0) target = $region17
    $region16: #{tpu_custom_call.1} parent=1 // pred_region
      %s63 = sadd.s32 0, 0
      %s64 = smul.u32 2, %s63
      %s66 = ssub.s32 256, 256
      %67 = vsyncadd [#allocation9], %s66
      %s68 = smul.addr %s64, 128
      %s69 = scalar_lea.hbm %s3, %s68
      %s70 = sshll.u32 [#allocation8], 4
      %s71 = int_to_ptr.vmem [resolvable:$true] %s70
      %76 = dma.hbm_to_vmem [thread:$0]  %s69, 256, %s71, [#allocation9], 128, 128, 8
    $region17: #{tpu_custom_call.1} parent=1 // pred_fallthru
      _
    // Predicated region
    $region18: #{tpu_custom_call.1} parent=1 // pred_check
      _
    $region19: #{tpu_custom_call.1} parent=1 // pred_check_branch
      %78 = sbr.rel (0) target = $region21
    $region20: #{tpu_custom_call.1} parent=1 // pred_region
      %79 = dma.done [#allocation3], 256
    $region21: #{tpu_custom_call.1} parent=1 // pred_fallthru
      _
    // Predicated region
    $region22: #{tpu_custom_call.1} parent=1 // pred_check
      _
    $region23: #{tpu_custom_call.1} parent=1 // pred_check_branch
      %81 = sbr.rel (0) target = $region25
    $region24: #{tpu_custom_call.1} parent=1 // pred_region
      %82 = dma.done [#allocation6], 256
    $region25: #{tpu_custom_call.1} parent=1 // pred_fallthru
      _
    // Predicated region
    $region26: #{tpu_custom_call.1} parent=1 // pred_check
      _
    $region27: #{tpu_custom_call.1} parent=1 // pred_check_branch
      %84 = sbr.rel (0) target = $region29
    $region28: #{tpu_custom_call.1} parent=1 // pred_region
      %85 = dma.done [#allocation6], 256
    $region29: #{tpu_custom_call.1} parent=1 // pred_fallthru
      _
    // Predicated region
    $region30: #{tpu_custom_call.1} parent=1 // pred_check
      _
    $region31: #{tpu_custom_call.1} parent=1 // pred_check_branch
      %87 = sbr.rel (0) target = $region33
    $region32: #{tpu_custom_call.1} parent=1 // pred_region
      %88 = dma.done [#allocation9], 256
    $region33: #{tpu_custom_call.1} parent=1 // pred_fallthru
      _
    %s89 = sadd.s32 0, 0
    %s90 = smul.u32 2, %s89
    %s91 = sadd.s32 0, 0
    %s92 = smul.u32 2, %s91
    %s93 = sadd.s32 0, 0
    %s94 = smul.u32 2, %s93
    %s95 = sadd.s32 0, 0
    %s96 = smul.u32 2, %s95
    %p97 = scmp.eq.s32.totalorder 0, 0
    // Predicated region
    $region34: #{tpu_custom_call.1} parent=1 // pred_check
      %p98 = pneg %p97
    $region35: #{tpu_custom_call.1} parent=1 // pred_check_branch
      %100 = sbr.rel (%p98) target = $region37
    $region36: #{tpu_custom_call.1} parent=1 // pred_region
      %101 = vst [vmem:[#allocation10] sm:$0xff] 0.0
      %102 = vst [vmem:[#allocation10 + $0x8] sm:$0xff] 0.0
      %103 = vst [vmem:[#allocation10 + $0x10] sm:$0xff] 0.0
      %104 = vst [vmem:[#allocation10 + $0x18] sm:$0xff] 0.0
    $region37: #{tpu_custom_call.1} parent=1 // pred_fallthru
      _
    %v105 = vld [vmem:[#allocation5] sm:$0xff]
    %v106 = vld [vmem:[#allocation5 + $0x8] sm:$0xff]
    %v107 = vsub.f32 1.0, %v105
    %v108 = vsub.f32 1.0, %v106
    %v109 = vmax.f32 %v107, 0.0
    %v110 = vmax.f32 %v108, 0.0
    %v111 = vld [vmem:[#allocation10] sm:$0xff]
    %v112 = vadd.f32 %v109, %v110
    %v113 = vadd.f32 %v111, %v112
    %114 = vst [vmem:[#allocation10] sm:$0xff] %v113
    %v115 = vld [vmem:[#allocation2] sm:$0xff]
    %v116 = vld [vmem:[#allocation2 + $0x8] sm:$0xff]
    %v117 = vadd.f32 %v115, 1.0
    %v118 = vadd.f32 %v116, 1.0
    %v119 = vmax.f32 %v117, 0.0
    %v120 = vmax.f32 %v118, 0.0
    %s121 = scalar_lea.vmem [#allocation10], 8
    %v122 = vld [vmem:[%s121] sm:$0xff]
    %v123 = vadd.f32 %v119, %v120
    %v124 = vadd.f32 %v122, %v123
    %125 = vst [vmem:[%s121] sm:$0xff] %v124
    %v126 = vld [vmem:[#allocation8] sm:$0xff]
    %v127 = vld [vmem:[#allocation8 + $0x8] sm:$0xff]
    %v128 = vsub.f32 1.0, %v126
    %v129 = vsub.f32 1.0, %v127
    %v130 = vmax.f32 %v128, 0.0
    %v131 = vmax.f32 %v129, 0.0
    %s132 = scalar_lea.vmem [#allocation10], 16
    %v133 = vld [vmem:[%s132] sm:$0xff]
    %v134 = vadd.f32 %v130, %v131
    %v135 = vadd.f32 %v133, %v134
    %136 = vst [vmem:[%s132] sm:$0xff] %v135
    %v137 = vld [vmem:[#allocation7] sm:$0xff]
    %v138 = vld [vmem:[#allocation7 + $0x8] sm:$0xff]
    %v139 = vadd.f32 %v137, 1.0
    %v140 = vadd.f32 %v138, 1.0
    %v141 = vmax.f32 %v139, 0.0
    %v142 = vmax.f32 %v140, 0.0
    %s143 = scalar_lea.vmem [#allocation10], 24
    %v144 = vld [vmem:[%s143] sm:$0xff]
    %v145 = vadd.f32 %v141, %v142
    %v146 = vadd.f32 %v144, %v145
    %147 = vst [vmem:[%s143] sm:$0xff] %v146
    // Predicated region
    $region38: #{tpu_custom_call.1} parent=1 // pred_check
      _
    $region39: #{tpu_custom_call.1} parent=1 // pred_check_branch
      %149 = sbr.rel (0) target = $region41
    $region40: #{tpu_custom_call.1} parent=1 // pred_region
      %s151 = ssub.s32 512, 512
      %152 = vsyncadd [#allocation4], %s151
      %s153 = sshll.u32 [#allocation10], 4
      %s154 = int_to_ptr.vmem [resolvable:$true] %s153
      %159 = dma.vmem_to_hbm [thread:$0]  %s154, 512, %s4, [#allocation4], 128, 128, 8
    $region41: #{tpu_custom_call.1} parent=1 // pred_fallthru
      _
    // Predicated region
    $region42: #{tpu_custom_call.1} parent=1 // pred_check
      _
    $region43: #{tpu_custom_call.1} parent=1 // pred_check_branch
      %161 = sbr.rel (0) target = $region45
    $region44: #{tpu_custom_call.1} parent=1 // pred_region
      %162 = dma.done [#allocation4], 512
    $region45: #{tpu_custom_call.1} parent=1 // pred_fallthru
      _
    %163 = vsyncpa [#allocation3], 1
    %164 = vsyncpa [#allocation6], 1
    %165 = vsyncpa [#allocation9], 1
    %166 = vsyncpa [#allocation4], 1

</llo_original>
